<compile_context>
chip_gen: v7x
topology: tpu7x:2x2x1
jax: 0.10.0
libtpu: 0.0.40
codegen_flags: <defaults>
</compile_context>

<pallas_src>
import jax
import jax.numpy as jnp
from jax.experimental import pallas as pl
from jax.experimental.pallas import tpu as pltpu


def _conv1x1_kernel(x_ref, w_ref, b_ref, o_ref):
    # x_ref: (TN, C, TR, 128) VMEM  input tile
    # w_ref: (C,)             SMEM  conv weight (squeezed from (1, C, 1, 1))
    # b_ref: (1,)             SMEM  conv bias
    # o_ref: (TN, TR, 128)    VMEM  output tile (single out channel, squeezed)
    C = x_ref.shape[1]
    # VPU multiply-accumulate over channels; C is small and static -> unroll.
    # TODO(synk): for very large C, switch to a tiled-C reduction (MXU path).
    acc = x_ref[:, 0].astype(jnp.float32) * w_ref[0]
    for c in range(1, C):
        acc = acc + x_ref[:, c].astype(jnp.float32) * w_ref[c]
    o_ref[...] = (acc + b_ref[0]).astype(o_ref.dtype)


def _round_up(x, m):
    return (x + m - 1) // m * m


def _largest_divisor_leq(n, cap):
    cap = max(1, min(n, cap))
    for d in range(cap, 0, -1):
        if n % d == 0:
            return d
    return 1


def fully_conv_layer(x, weight, bias, *, target_x_bytes=2 * 1024 * 1024):
    """x: (N, C, H, W); weight: (1, C, 1, 1); bias: (1,) -> (N, 1, H, W)."""
    N, C, H, W = x.shape
    HW = H * W
    itemsize = x.dtype.itemsize

    # --- spatial tiling: view HW as (rows, 128); tile rows by TILE_R ---
    rows = pl.cdiv(HW, 128)
    max_tile_r = max(8, (target_x_bytes // (C * 128 * itemsize)) // 8 * 8)
    if rows <= max_tile_r:
        tile_r = rows                 # full extent (legal even if not %8)
        rows_pad = rows
    else:
        tile_r = max_tile_r           # multiple of 8
        rows_pad = _round_up(rows, tile_r)
    hw_pad = rows_pad * 128

    # --- batch tiling: pack several N per step if the spatial payload is small
    per_n_bytes = C * tile_r * 128 * itemsize
    tile_n = _largest_divisor_leq(N, max(1, target_x_bytes // per_n_bytes))

    # --- reshape / pad input to (N, C, rows_pad, 128) ---
    x_flat = x.reshape(N, C, HW)
    if hw_pad != HW:
        x_flat = jnp.pad(x_flat, ((0, 0), (0, 0), (0, hw_pad - HW)))
    x_tiled = x_flat.reshape(N, C, rows_pad, 128)

    w_vec = weight.reshape(C).astype(jnp.float32)
    b_vec = bias.reshape(1).astype(jnp.float32)

    grid = (N // tile_n, rows_pad // tile_r)

    cost = pl.CostEstimate(
        flops=2 * N * C * HW,
        transcendentals=0,
        bytes_accessed=(N * C * HW + N * HW) * itemsize + (C + 1) * 4,
    )

    out_tiled = pl.pallas_call(
        _conv1x1_kernel,
        out_shape=jax.ShapeDtypeStruct((N, rows_pad, 128), x.dtype),
        grid_spec=pltpu.PrefetchScalarGridSpec(
            num_scalar_prefetch=0,
            grid=grid,
            in_specs=[
                pl.BlockSpec((tile_n, C, tile_r, 128),
                             lambda nb, rb: (nb, 0, rb, 0)),
                pl.BlockSpec(memory_space=pltpu.MemorySpace.SMEM),
                pl.BlockSpec(memory_space=pltpu.MemorySpace.SMEM),
            ],
            out_specs=pl.BlockSpec((tile_n, tile_r, 128),
                                   lambda nb, rb: (nb, rb, 0)),
        ),
        compiler_params=pltpu.CompilerParams(
            dimension_semantics=("parallel", "parallel")),
        cost_estimate=cost,
    )(x_tiled, w_vec, b_vec)

    out = out_tiled.reshape(N, hw_pad)[:, :HW].reshape(N, 1, H, W)
    return out


if __name__ == "__main__":
    key = jax.random.PRNGKey(0)
    kx, kw, kb = jax.random.split(key, 3)

    N, C, H, W = 2, 4, 16, 16
    x = jax.random.normal(kx, (N, C, H, W), dtype=jnp.float32)

    # Deterministic parameter init (mimics Conv2d-style uniform fan-in bound).
    bound = 1.0 / (C ** 0.5)
    weight = jax.random.uniform(kw, (1, C, 1, 1), dtype=jnp.float32,
                                minval=-bound, maxval=bound)
    bias = jax.random.uniform(kb, (1,), dtype=jnp.float32,
                              minval=-bound, maxval=bound)

    y = fully_conv_layer(x, weight, bias)
    y = jax.block_until_ready(y)

    # Reference check (plain JAX)
    y_ref = jnp.einsum("nchw,c->nhw", x, weight.reshape(C)) + bias[0]
    y_ref = y_ref[:, None, :, :]
    assert y.shape == (N, 1, H, W)
    assert jnp.allclose(y, y_ref, atol=1e-5, rtol=1e-5)

    print("KERNEL_OK")
</pallas_src>

<mosaic_0001>
module attributes {stable_mosaic.version = 11 : i64} {
  func.func @_conv1x1_kernel(%arg0: i32, %arg1: i32, %arg2: memref<2x4x2x128xf32, #tpu.memory_space<vmem>>, %arg3: memref<4xf32, #tpu.memory_space<smem>>, %arg4: memref<1xf32, #tpu.memory_space<smem>>, %arg5: memref<2x2x128xf32, #tpu.memory_space<vmem>>) attributes {dimension_semantics = [#tpu.dimension_semantics<parallel>, #tpu.dimension_semantics<parallel>], iteration_bounds = array<i64: 1, 1>, scalar_prefetch = 0 : i64, scratch_operands = 0 : i64, tpu.core_type = #tpu.core_type<tc>, window_params = [{transform_indices = @transform_0, window_bounds = array<i64: 2, 4, 2, 128>}, {transform_indices = @transform_1, window_bounds = array<i64: 4>}, {transform_indices = @transform_2, window_bounds = array<i64: 1>}, {transform_indices = @transform_3, window_bounds = array<i64: 2, 2, 128>}]} {
    %c0 = arith.constant 0 : index
    %c0_0 = arith.constant 0 : index
    %c0_1 = arith.constant 0 : index
    %c0_2 = arith.constant 0 : index
    %0 = vector.load %arg2[%c0, %c0_0, %c0_1, %c0_2] : memref<2x4x2x128xf32, #tpu.memory_space<vmem>>, vector<2x1x2x128xf32>
    %1 = vector.shape_cast %0 : vector<2x1x2x128xf32> to vector<2x2x128xf32>
    %c0_3 = arith.constant 0 : index
    %2 = memref.load %arg3[%c0_3] : memref<4xf32, #tpu.memory_space<smem>>
    %3 = vector.broadcast %2 : f32 to vector<2x2x128xf32>
    %4 = arith.mulf %1, %3 : vector<2x2x128xf32>
    %c0_4 = arith.constant 0 : index
    %c1 = arith.constant 1 : index
    %c0_5 = arith.constant 0 : index
    %c0_6 = arith.constant 0 : index
    %5 = vector.load %arg2[%c0_4, %c1, %c0_5, %c0_6] : memref<2x4x2x128xf32, #tpu.memory_space<vmem>>, vector<2x1x2x128xf32>
    %6 = vector.shape_cast %5 : vector<2x1x2x128xf32> to vector<2x2x128xf32>
    %c1_7 = arith.constant 1 : index
    %7 = memref.load %arg3[%c1_7] : memref<4xf32, #tpu.memory_space<smem>>
    %8 = vector.broadcast %7 : f32 to vector<2x2x128xf32>
    %9 = arith.mulf %6, %8 : vector<2x2x128xf32>
    %10 = arith.addf %4, %9 : vector<2x2x128xf32>
    %c0_8 = arith.constant 0 : index
    %c2 = arith.constant 2 : index
    %c0_9 = arith.constant 0 : index
    %c0_10 = arith.constant 0 : index
    %11 = vector.load %arg2[%c0_8, %c2, %c0_9, %c0_10] : memref<2x4x2x128xf32, #tpu.memory_space<vmem>>, vector<2x1x2x128xf32>
    %12 = vector.shape_cast %11 : vector<2x1x2x128xf32> to vector<2x2x128xf32>
    %c2_11 = arith.constant 2 : index
    %13 = memref.load %arg3[%c2_11] : memref<4xf32, #tpu.memory_space<smem>>
    %14 = vector.broadcast %13 : f32 to vector<2x2x128xf32>
    %15 = arith.mulf %12, %14 : vector<2x2x128xf32>
    %16 = arith.addf %10, %15 : vector<2x2x128xf32>
    %c0_12 = arith.constant 0 : index
    %c3 = arith.constant 3 : index
    %c0_13 = arith.constant 0 : index
    %c0_14 = arith.constant 0 : index
    %17 = vector.load %arg2[%c0_12, %c3, %c0_13, %c0_14] : memref<2x4x2x128xf32, #tpu.memory_space<vmem>>, vector<2x1x2x128xf32>
    %18 = vector.shape_cast %17 : vector<2x1x2x128xf32> to vector<2x2x128xf32>
    %c3_15 = arith.constant 3 : index
    %19 = memref.load %arg3[%c3_15] : memref<4xf32, #tpu.memory_space<smem>>
    %20 = vector.broadcast %19 : f32 to vector<2x2x128xf32>
    %21 = arith.mulf %18, %20 : vector<2x2x128xf32>
    %22 = arith.addf %16, %21 : vector<2x2x128xf32>
    %c0_16 = arith.constant 0 : index
    %23 = memref.load %arg4[%c0_16] : memref<1xf32, #tpu.memory_space<smem>>
    %24 = vector.broadcast %23 : f32 to vector<2x2x128xf32>
    %25 = arith.addf %22, %24 : vector<2x2x128xf32>
    %c0_17 = arith.constant 0 : index
    %c0_18 = arith.constant 0 : index
    %c0_19 = arith.constant 0 : index
    %26 = vector.load %arg5[%c0_17, %c0_18, %c0_19] : memref<2x2x128xf32, #tpu.memory_space<vmem>>, vector<2x2x128xf32>
    tpu.vector_store %arg5[%c0_17, %c0_18, %c0_19], %25 {strides = array<i32>} : memref<2x2x128xf32, #tpu.memory_space<vmem>>, vector<2x2x128xf32>,
    return
  }
  func.func @transform_0(%arg0: i32, %arg1: i32) -> (i32, i32, i32, i32) {
    %c0_i32 = arith.constant 0 : i32
    %c0_i32_0 = arith.constant 0 : i32
    %c0_i32_1 = arith.constant 0 : i32
    return %arg0, %c0_i32, %arg1, %c0_i32_0 : i32, i32, i32, i32
  }
  func.func @transform_1(%arg0: i32, %arg1: i32) -> i32 {
    %c0_i32 = arith.constant 0 : i32
    %c0_i32_0 = arith.constant 0 : i32
    return %c0_i32 : i32
  }
  func.func @transform_2(%arg0: i32, %arg1: i32) -> i32 {
    %c0_i32 = arith.constant 0 : i32
    %c0_i32_0 = arith.constant 0 : i32
    return %c0_i32 : i32
  }
  func.func @transform_3(%arg0: i32, %arg1: i32) -> (i32, i32, i32) {
    %c0_i32 = arith.constant 0 : i32
    %c0_i32_0 = arith.constant 0 : i32
    return %arg0, %arg1, %c0_i32 : i32, i32, i32
  }
}

</mosaic_0001>

<llo_original>
// kernel: tpu_custom_call.1
$region0: #{tpu_custom_call.1}
  #allocation0 [shape = 'u32[]', space=smem, size = 0x4, offset = 0x4, fixed_abs, tag = 'smem constant byte address 0x4 - core index']
  #allocation1 [shape = 'u32[144,128]{1,0:T(1,128)}', space=vmem, size = 0x12000, scoped, tag = 'internal scratch']
  #allocation2 [shape = 'f32[1]{0:T(128)S(6)}', space=smem, size = 0x200, scoped, tag = 'scoped memory for tpu_custom_call.1']
  %s0 = inlined_call_operand.hbm [shape: f32[2,4,2,128], index: 0, kind: input, shape index: {}]
  %s1 = inlined_call_operand.vmem [shape: f32[4], index: 1, kind: input, shape index: {}]
  %s2 = inlined_call_operand.<no memory space> [shape: f32[1], index: 2, kind: input, shape index: {}]
  %s3 = inlined_call_operand.hbm [shape: f32[2,2,128], index: 3, kind: output, shape index: {}]
  %s4 = sld [smem:[#allocation0]]
  $region30: #{tpu_custom_call.1} parent=0
    _
  %s6 = ssub.s32 1, %s4
  %s7 = scalar_select 0, %s6, %s4
  %8 = sst [smem:[#allocation2]] %s2
  $region1: #{tpu_custom_call.1} parent=0
    #allocation3 [shape = 'u8[8192]{0}', space=vmem, size = 0x2000, scoped, tag = 'input window, operand 0, single buffered']
    #allocation4 [shape = 's32[1]{0}', space=sflag, size = 0x4, scoped, tag = 'scoped memory for tpu_custom_call.1']
    #allocation5 [shape = 's32[1]{0}', space=sflag, size = 0x4, scoped, tag = 'scoped memory for tpu_custom_call.1']
    #allocation6 [shape = 's32[1]{0}', space=sflag, size = 0x4, scoped, tag = 'scoped memory for tpu_custom_call.1']
    #allocation7 [shape = 'u8[512]{0}', space=smem, size = 0x200, scoped, tag = 'input window, operand 1, single buffered']
    #allocation8 [shape = 'u8[2048]{0}', space=vmem, size = 0x800, scoped, tag = 'output window, operand 0, single buffered']
    %9 = vsyncpa [#allocation4], 0
    %10 = vsyncpa [#allocation6], 0
    %11 = vsyncpa [#allocation5], 0
    // Predicated region
    $region2: #{tpu_custom_call.1} parent=1 // pred_check
      _
    $region3: #{tpu_custom_call.1} parent=1 // pred_check_branch
      %13 = sbr.rel (0) target = $region5
    $region4: #{tpu_custom_call.1} parent=1 // pred_region
      %s15 = ssub.s32 256, 256
      %16 = vsyncadd [#allocation4], %s15
      %s17 = sshll.u32 [#allocation3], 4
      %s18 = int_to_ptr.vmem [resolvable:$true] %s17
      %23 = dma.hbm_to_vmem [thread:$0]  %s0, 256, %s18, [#allocation4], 32, 32, 2
    $region5: #{tpu_custom_call.1} parent=1 // pred_fallthru
      _
    // Predicated region
    $region6: #{tpu_custom_call.1} parent=1 // pred_check
      _
    $region7: #{tpu_custom_call.1} parent=1 // pred_check_branch
      %25 = sbr.rel (0) target = $region9
    $region8: #{tpu_custom_call.1} parent=1 // pred_region
      %s27 = ssub.s32 16, 16
      %28 = vsyncadd [#allocation6], %s27
      %s30 = sshll.u32 %s1, 4
      %s31 = int_to_ptr.vmem [resolvable:$true] %s30
      %33 = dma.vmem_to_smem %s31, 16, [#allocation7], [#allocation6]
    $region9: #{tpu_custom_call.1} parent=1 // pred_fallthru
      _
    // Predicated region
    $region10: #{tpu_custom_call.1} parent=1 // pred_check
      _
    $region11: #{tpu_custom_call.1} parent=1 // pred_check_branch
      %35 = sbr.rel (0) target = $region13
    $region12: #{tpu_custom_call.1} parent=1 // pred_region
      _
    $region13: #{tpu_custom_call.1} parent=1 // pred_fallthru
      _
    // Predicated region
    $region14: #{tpu_custom_call.1} parent=1 // pred_check
      _
    $region15: #{tpu_custom_call.1} parent=1 // pred_check_branch
      %37 = sbr.rel (0) target = $region17
    $region16: #{tpu_custom_call.1} parent=1 // pred_region
      %38 = dma.done [#allocation4], 256
    $region17: #{tpu_custom_call.1} parent=1 // pred_fallthru
      _
    // Predicated region
    $region18: #{tpu_custom_call.1} parent=1 // pred_check
      _
    $region19: #{tpu_custom_call.1} parent=1 // pred_check_branch
      %40 = sbr.rel (0) target = $region21
    $region20: #{tpu_custom_call.1} parent=1 // pred_region
      %41 = dma.done [#allocation6], 16
    $region21: #{tpu_custom_call.1} parent=1 // pred_fallthru
      _
    %42 = sfence
    %v43 = vld [vmem:[#allocation3] sm:$0x3]
    %v44 = vld [vmem:[#allocation3 + $0x8] sm:$0x3]
    %s45 = sld [smem:[#allocation7]]
    %v46 = vstv %s45
    %v47 = vmul.f32 %v43, %v46
    %v48 = vmul.f32 %v44, %v46
    %s49 = scalar_lea.vmem [#allocation3], 2
    %v50 = vld [vmem:[%s49] sm:$0x3]
    %v51 = vld [vmem:[%s49 + $0x8] sm:$0x3]
    %s52 = sld [smem:[#allocation7 + $0x1]]
    %v53 = vstv %s52
    %v54 = vmul.f32 %v50, %v53
    %v55 = vmul.f32 %v51, %v53
    %v56 = vadd.f32 %v47, %v54
    %v57 = vadd.f32 %v48, %v55
    %s58 = scalar_lea.vmem [#allocation3], 4
    %v59 = vld [vmem:[%s58] sm:$0x3]
    %v60 = vld [vmem:[%s58 + $0x8] sm:$0x3]
    %s61 = sld [smem:[#allocation7 + $0x2]]
    %v62 = vstv %s61
    %v63 = vmul.f32 %v59, %v62
    %v64 = vmul.f32 %v60, %v62
    %v65 = vadd.f32 %v56, %v63
    %v66 = vadd.f32 %v57, %v64
    %s67 = scalar_lea.vmem [#allocation3], 6
    %v68 = vld [vmem:[%s67] sm:$0x3]
    %v69 = vld [vmem:[%s67 + $0x8] sm:$0x3]
    %s70 = sld [smem:[#allocation7 + $0x3]]
    %v71 = vstv %s70
    %v72 = vmul.f32 %v68, %v71
    %v73 = vmul.f32 %v69, %v71
    %v74 = vadd.f32 %v65, %v72
    %v75 = vadd.f32 %v66, %v73
    %s76 = sld [smem:[#allocation2]]
    %v77 = vstv %s76
    %v78 = vadd.f32 %v74, %v77
    %v79 = vadd.f32 %v75, %v77
    %80 = vst [vmem:[#allocation8] sm:$0x3] %v78
    %81 = vst [vmem:[#allocation8 + $0x2] sm:$0x3] %v79
    // Predicated region
    $region22: #{tpu_custom_call.1} parent=1 // pred_check
      _
    $region23: #{tpu_custom_call.1} parent=1 // pred_check_branch
      %83 = sbr.rel (0) target = $region25
    $region24: #{tpu_custom_call.1} parent=1 // pred_region
      %s85 = ssub.s32 64, 64
      %86 = vsyncadd [#allocation5], %s85
      %s87 = sshll.u32 [#allocation8], 4
      %s88 = int_to_ptr.vmem [resolvable:$true] %s87
      %93 = dma.vmem_to_hbm [thread:$0]  %s88, 64, %s3, [#allocation5], 32, 32, 2
    $region25: #{tpu_custom_call.1} parent=1 // pred_fallthru
      _
    // Predicated region
    $region26: #{tpu_custom_call.1} parent=1 // pred_check
      _
    $region27: #{tpu_custom_call.1} parent=1 // pred_check_branch
      %95 = sbr.rel (0) target = $region29
    $region28: #{tpu_custom_call.1} parent=1 // pred_region
      %96 = dma.done [#allocation5], 64
    $region29: #{tpu_custom_call.1} parent=1 // pred_fallthru
      _
    %97 = vsyncpa [#allocation4], 1
    %98 = vsyncpa [#allocation5], 1
    %99 = vsyncpa [#allocation6], 1

</llo_original>
